<compile_context>
chip_gen: v7x
topology: tpu7x:2x2x1
jax: 0.10.0
libtpu: 0.0.40
codegen_flags: <defaults>
</compile_context>

<pallas_src>
import jax
import jax.numpy as jnp
from jax.experimental import pallas as pl
from jax.experimental.pallas import tpu as pltpu

IN_F, H1, H2, H3, OUT_F = 4, 64, 32, 16, 4


def _mlp_kernel(x_ref, w1_ref, b1_ref, w2_ref, b2_ref,
                w3_ref, b3_ref, w4_ref, b4_ref, o_ref):
    # x block: (tile, 4).  Weights are the tiny true (in, out) bf16 matrices, resident
    # in VMEM across all grid steps; biases are (1, out) f32 and broadcast over rows.
    # bf16 MXU inputs, f32 accumulation, bias add + ReLU kept in f32.
    h = x_ref[...].astype(jnp.bfloat16)
    h = jnp.dot(h, w1_ref[...], preferred_element_type=jnp.float32) + b1_ref[...]
    h = jnp.maximum(h, 0.0).astype(jnp.bfloat16)
    h = jnp.dot(h, w2_ref[...], preferred_element_type=jnp.float32) + b2_ref[...]
    h = jnp.maximum(h, 0.0).astype(jnp.bfloat16)
    h = jnp.dot(h, w3_ref[...], preferred_element_type=jnp.float32) + b3_ref[...]
    h = jnp.maximum(h, 0.0).astype(jnp.bfloat16)
    h = jnp.dot(h, w4_ref[...], preferred_element_type=jnp.float32) + b4_ref[...]
    o_ref[...] = h.astype(o_ref.dtype)


def _round_up(n, m):
    return (n + m - 1) // m * m


def soil_health_predictor(x, params, *, batch_tile=4096):
    """x: [batch, 4] float32; params: dict of w1..w4 ([in,out]) and b1..b4 ([1,out])."""
    batch, feat = x.shape
    assert feat == IN_F

    # Rows per grid step must be a multiple of 8 (sublane quantum).  Clamp the tile so
    # the grid has at least 2 steps whenever batch > 8: the batch axis is marked
    # "parallel", so >=2 steps let v7x shard it across both TensorCores.
    half = _round_up(max(1, -(-batch // 2)), 8)
    tile = max(8, min(_round_up(batch_tile, 8), half))
    padded = _round_up(batch, tile)
    if padded != batch:
        x = jnp.pad(x, ((0, padded - batch), (0, 0)))

    # Tiny true weights (no packing); bf16 for the MXU, biases stay f32.
    w = [params[f"w{i}"].astype(jnp.bfloat16) for i in range(1, 5)]
    b = [params[f"b{i}"].astype(jnp.float32) for i in range(1, 5)]

    in_spec = pl.BlockSpec((tile, IN_F), lambda i: (i, 0))
    out_spec = pl.BlockSpec((tile, OUT_F), lambda i: (i, 0))
    resident = lambda a: pl.BlockSpec(a.shape, lambda i: (0, 0))

    flops = 2 * padded * (IN_F * H1 + H1 * H2 + H2 * H3 + H3 * OUT_F)
    bytes_accessed = int(padded * (IN_F + OUT_F) * 4
                         + sum(int(a.size) * a.dtype.itemsize for a in w + b))

    out = pl.pallas_call(
        _mlp_kernel,
        out_shape=jax.ShapeDtypeStruct((padded, OUT_F), jnp.float32),
        grid=(padded // tile,),
        in_specs=[in_spec,
                  resident(w[0]), resident(b[0]),
                  resident(w[1]), resident(b[1]),
                  resident(w[2]), resident(b[2]),
                  resident(w[3]), resident(b[3])],
        out_specs=out_spec,
        compiler_params=pltpu.CompilerParams(
            dimension_semantics=("parallel",),
            vmem_limit_bytes=48 * 1024 * 1024),
        cost_estimate=pl.CostEstimate(
            flops=flops, transcendentals=0, bytes_accessed=bytes_accessed),
    )(x, w[0], b[0], w[1], b[1], w[2], b[2], w[3], b[3])

    return out[:batch]


def init_params(key):
    """nn.Linear-shaped params (4->64->32->16->4): weights [in,out], biases [1,out],
    U(-1/sqrt(in), 1/sqrt(in)) like PyTorch's default init."""
    dims = [(IN_F, H1), (H1, H2), (H2, H3), (H3, OUT_F)]
    params = {}
    for i, (fan_in, fan_out) in enumerate(dims, start=1):
        key, kw, kb = jax.random.split(key, 3)
        bound = 1.0 / jnp.sqrt(jnp.float32(fan_in))
        params[f"w{i}"] = jax.random.uniform(
            kw, (fan_in, fan_out), jnp.float32, -bound, bound)
        params[f"b{i}"] = jax.random.uniform(
            kb, (1, fan_out), jnp.float32, -bound, bound)
    return params


def reference_forward(x, params):
    h = jnp.maximum(x @ params["w1"] + params["b1"], 0.0)
    h = jnp.maximum(h @ params["w2"] + params["b2"], 0.0)
    h = jnp.maximum(h @ params["w3"] + params["b3"], 0.0)
    return h @ params["w4"] + params["b4"]


if __name__ == "__main__":
    key = jax.random.PRNGKey(0)
    key, kx = jax.random.split(key)

    batch = 64
    x = jax.random.normal(kx, (batch, IN_F), jnp.float32)
    params = init_params(key)

    out = soil_health_predictor(x, params)
    out = jax.block_until_ready(out)

    ref = reference_forward(x, params)
    assert out.shape == (batch, OUT_F)
    # bf16 matmul inputs (f32 accumulation) -> loosened tolerance vs. the pure-f32 reference.
    assert jnp.allclose(out, ref, atol=5e-2, rtol=5e-2), float(jnp.max(jnp.abs(out - ref)))

    print("KERNEL_OK")
</pallas_src>

<mosaic_0001>
module attributes {stable_mosaic.version = 11 : i64} {
  func.func @_mlp_kernel(%arg0: i32, %arg1: memref<32x4xf32, #tpu.memory_space<vmem>>, %arg2: memref<4x64xbf16, #tpu.memory_space<vmem>>, %arg3: memref<1x64xf32, #tpu.memory_space<vmem>>, %arg4: memref<64x32xbf16, #tpu.memory_space<vmem>>, %arg5: memref<1x32xf32, #tpu.memory_space<vmem>>, %arg6: memref<32x16xbf16, #tpu.memory_space<vmem>>, %arg7: memref<1x16xf32, #tpu.memory_space<vmem>>, %arg8: memref<16x4xbf16, #tpu.memory_space<vmem>>, %arg9: memref<1x4xf32, #tpu.memory_space<vmem>>, %arg10: memref<32x4xf32, #tpu.memory_space<vmem>>) attributes {dimension_semantics = [#tpu.dimension_semantics<parallel>], iteration_bounds = array<i64: 2>, scalar_prefetch = 0 : i64, scratch_operands = 0 : i64, tpu.core_type = #tpu.core_type<tc>, window_params = [{transform_indices = @transform_0, window_bounds = array<i64: 32, 4>}, {pipeline_mode = #tpu.pipeline_mode<synchronous>, transform_indices = @transform_1, window_bounds = array<i64: 4, 64>}, {pipeline_mode = #tpu.pipeline_mode<synchronous>, transform_indices = @transform_2, window_bounds = array<i64: 1, 64>}, {pipeline_mode = #tpu.pipeline_mode<synchronous>, transform_indices = @transform_3, window_bounds = array<i64: 64, 32>}, {pipeline_mode = #tpu.pipeline_mode<synchronous>, transform_indices = @transform_4, window_bounds = array<i64: 1, 32>}, {pipeline_mode = #tpu.pipeline_mode<synchronous>, transform_indices = @transform_5, window_bounds = array<i64: 32, 16>}, {pipeline_mode = #tpu.pipeline_mode<synchronous>, transform_indices = @transform_6, window_bounds = array<i64: 1, 16>}, {pipeline_mode = #tpu.pipeline_mode<synchronous>, transform_indices = @transform_7, window_bounds = array<i64: 16, 4>}, {pipeline_mode = #tpu.pipeline_mode<synchronous>, transform_indices = @transform_8, window_bounds = array<i64: 1, 4>}, {transform_indices = @transform_9, window_bounds = array<i64: 32, 4>}]} {
    %c0 = arith.constant 0 : index
    %c0_0 = arith.constant 0 : index
    %0 = vector.load %arg1[%c0, %c0_0] : memref<32x4xf32, #tpu.memory_space<vmem>>, vector<32x4xf32>
    %1 = arith.truncf %0 : vector<32x4xf32> to vector<32x4xbf16>
    %c0_1 = arith.constant 0 : index
    %c0_2 = arith.constant 0 : index
    %2 = vector.load %arg2[%c0_1, %c0_2] : memref<4x64xbf16, #tpu.memory_space<vmem>>, vector<4x64xbf16>
    %cst = arith.constant dense<0.000000e+00> : vector<32x64xf32>
    %3 = tpu.matmul %1, %2, %cst {dimension_numbers = #tpu.dot_dimension_numbers<[1], [0], [0], [1], [0, 0, 1, 1], [], []>} : vector<32x4xbf16>, vector<4x64xbf16>, vector<32x64xf32> -> vector<32x64xf32>
    %c0_3 = arith.constant 0 : index
    %c0_4 = arith.constant 0 : index
    %4 = vector.load %arg3[%c0_3, %c0_4] : memref<1x64xf32, #tpu.memory_space<vmem>>, vector<1x64xf32>
    %5 = vector.broadcast %4 : vector<1x64xf32> to vector<32x64xf32>
    %6 = arith.addf %3, %5 : vector<32x64xf32>
    %cst_5 = arith.constant 0.000000e+00 : f32
    %7 = vector.broadcast %cst_5 : f32 to vector<32x64xf32>
    %8 = arith.maximumf %6, %7 : vector<32x64xf32>
    %9 = arith.truncf %8 : vector<32x64xf32> to vector<32x64xbf16>
    %c0_6 = arith.constant 0 : index
    %c0_7 = arith.constant 0 : index
    %10 = vector.load %arg4[%c0_6, %c0_7] : memref<64x32xbf16, #tpu.memory_space<vmem>>, vector<64x32xbf16>
    %cst_8 = arith.constant dense<0.000000e+00> : vector<32x32xf32>
    %11 = tpu.matmul %9, %10, %cst_8 {dimension_numbers = #tpu.dot_dimension_numbers<[1], [0], [0], [1], [0, 0, 1, 1], [], []>} : vector<32x64xbf16>, vector<64x32xbf16>, vector<32x32xf32> -> vector<32x32xf32>
    %c0_9 = arith.constant 0 : index
    %c0_10 = arith.constant 0 : index
    %12 = vector.load %arg5[%c0_9, %c0_10] : memref<1x32xf32, #tpu.memory_space<vmem>>, vector<1x32xf32>
    %13 = vector.broadcast %12 : vector<1x32xf32> to vector<32x32xf32>
    %14 = arith.addf %11, %13 : vector<32x32xf32>
    %cst_11 = arith.constant 0.000000e+00 : f32
    %15 = vector.broadcast %cst_11 : f32 to vector<32x32xf32>
    %16 = arith.maximumf %14, %15 : vector<32x32xf32>
    %17 = arith.truncf %16 : vector<32x32xf32> to vector<32x32xbf16>
    %c0_12 = arith.constant 0 : index
    %c0_13 = arith.constant 0 : index
    %18 = vector.load %arg6[%c0_12, %c0_13] : memref<32x16xbf16, #tpu.memory_space<vmem>>, vector<32x16xbf16>
    %cst_14 = arith.constant dense<0.000000e+00> : vector<32x16xf32>
    %19 = tpu.matmul %17, %18, %cst_14 {dimension_numbers = #tpu.dot_dimension_numbers<[1], [0], [0], [1], [0, 0, 1, 1], [], []>} : vector<32x32xbf16>, vector<32x16xbf16>, vector<32x16xf32> -> vector<32x16xf32>
    %c0_15 = arith.constant 0 : index
    %c0_16 = arith.constant 0 : index
    %20 = vector.load %arg7[%c0_15, %c0_16] : memref<1x16xf32, #tpu.memory_space<vmem>>, vector<1x16xf32>
    %21 = vector.broadcast %20 : vector<1x16xf32> to vector<32x16xf32>
    %22 = arith.addf %19, %21 : vector<32x16xf32>
    %cst_17 = arith.constant 0.000000e+00 : f32
    %23 = vector.broadcast %cst_17 : f32 to vector<32x16xf32>
    %24 = arith.maximumf %22, %23 : vector<32x16xf32>
    %25 = arith.truncf %24 : vector<32x16xf32> to vector<32x16xbf16>
    %c0_18 = arith.constant 0 : index
    %c0_19 = arith.constant 0 : index
    %26 = vector.load %arg8[%c0_18, %c0_19] : memref<16x4xbf16, #tpu.memory_space<vmem>>, vector<16x4xbf16>
    %cst_20 = arith.constant dense<0.000000e+00> : vector<32x4xf32>
    %27 = tpu.matmul %25, %26, %cst_20 {dimension_numbers = #tpu.dot_dimension_numbers<[1], [0], [0], [1], [0, 0, 1, 1], [], []>} : vector<32x16xbf16>, vector<16x4xbf16>, vector<32x4xf32> -> vector<32x4xf32>
    %c0_21 = arith.constant 0 : index
    %c0_22 = arith.constant 0 : index
    %28 = vector.load %arg9[%c0_21, %c0_22] : memref<1x4xf32, #tpu.memory_space<vmem>>, vector<1x4xf32>
    %29 = vector.broadcast %28 : vector<1x4xf32> to vector<32x4xf32>
    %30 = arith.addf %27, %29 : vector<32x4xf32>
    %c0_23 = arith.constant 0 : index
    %c0_24 = arith.constant 0 : index
    %31 = vector.load %arg10[%c0_23, %c0_24] : memref<32x4xf32, #tpu.memory_space<vmem>>, vector<32x4xf32>
    tpu.vector_store %arg10[%c0_23, %c0_24], %30 {strides = array<i32>} : memref<32x4xf32, #tpu.memory_space<vmem>>, vector<32x4xf32>,
    return
  }
  func.func @transform_0(%arg0: i32) -> (i32, i32) {
    %c0_i32 = arith.constant 0 : i32
    %c0_i32_0 = arith.constant 0 : i32
    return %arg0, %c0_i32 : i32, i32
  }
  func.func @transform_1(%arg0: i32) -> (i32, i32) {
    %c0_i32 = arith.constant 0 : i32
    %c0_i32_0 = arith.constant 0 : i32
    %c0_i32_1 = arith.constant 0 : i32
    return %c0_i32, %c0_i32_0 : i32, i32
  }
  func.func @transform_2(%arg0: i32) -> (i32, i32) {
    %c0_i32 = arith.constant 0 : i32
    %c0_i32_0 = arith.constant 0 : i32
    %c0_i32_1 = arith.constant 0 : i32
    return %c0_i32, %c0_i32_0 : i32, i32
  }
  func.func @transform_3(%arg0: i32) -> (i32, i32) {
    %c0_i32 = arith.constant 0 : i32
    %c0_i32_0 = arith.constant 0 : i32
    %c0_i32_1 = arith.constant 0 : i32
    return %c0_i32, %c0_i32_0 : i32, i32
  }
  func.func @transform_4(%arg0: i32) -> (i32, i32) {
    %c0_i32 = arith.constant 0 : i32
    %c0_i32_0 = arith.constant 0 : i32
    %c0_i32_1 = arith.constant 0 : i32
    return %c0_i32, %c0_i32_0 : i32, i32
  }
  func.func @transform_5(%arg0: i32) -> (i32, i32) {
    %c0_i32 = arith.constant 0 : i32
    %c0_i32_0 = arith.constant 0 : i32
    %c0_i32_1 = arith.constant 0 : i32
    return %c0_i32, %c0_i32_0 : i32, i32
  }
  func.func @transform_6(%arg0: i32) -> (i32, i32) {
    %c0_i32 = arith.constant 0 : i32
    %c0_i32_0 = arith.constant 0 : i32
    %c0_i32_1 = arith.constant 0 : i32
    return %c0_i32, %c0_i32_0 : i32, i32
  }
  func.func @transform_7(%arg0: i32) -> (i32, i32) {
    %c0_i32 = arith.constant 0 : i32
    %c0_i32_0 = arith.constant 0 : i32
    %c0_i32_1 = arith.constant 0 : i32
    return %c0_i32, %c0_i32_0 : i32, i32
  }
  func.func @transform_8(%arg0: i32) -> (i32, i32) {
    %c0_i32 = arith.constant 0 : i32
    %c0_i32_0 = arith.constant 0 : i32
    %c0_i32_1 = arith.constant 0 : i32
    return %c0_i32, %c0_i32_0 : i32, i32
  }
  func.func @transform_9(%arg0: i32) -> (i32, i32) {
    %c0_i32 = arith.constant 0 : i32
    %c0_i32_0 = arith.constant 0 : i32
    return %arg0, %c0_i32 : i32, i32
  }
}

</mosaic_0001>

<llo_original>
// kernel: tpu_custom_call.1
$region0: #{tpu_custom_call.1}
  #allocation0 [shape = 'u32[]', space=smem, size = 0x4, offset = 0x4, fixed_abs, tag = 'smem constant byte address 0x4 - core index']
  #allocation1 [shape = 'u32[144,128]{1,0:T(1,128)}', space=vmem, size = 0x12000, scoped, tag = 'internal scratch']
  %s0 = inlined_call_operand.vmem [shape: f32[64,4], index: 0, kind: input, shape index: {}]
  %s1 = inlined_call_operand.vmem [shape: bf16[4,64], index: 1, kind: input, shape index: {}]
  %s2 = inlined_call_operand.vmem [shape: f32[1,64], index: 2, kind: input, shape index: {}]
  %s3 = inlined_call_operand.vmem [shape: bf16[64,32], index: 3, kind: input, shape index: {}]
  %s4 = inlined_call_operand.vmem [shape: f32[1,32], index: 4, kind: input, shape index: {}]
  %s5 = inlined_call_operand.vmem [shape: bf16[32,16], index: 5, kind: input, shape index: {}]
  %s6 = inlined_call_operand.vmem [shape: f32[1,16], index: 6, kind: input, shape index: {}]
  %s7 = inlined_call_operand.vmem [shape: bf16[16,4], index: 7, kind: input, shape index: {}]
  %s8 = inlined_call_operand.vmem [shape: f32[1,4], index: 8, kind: input, shape index: {}]
  %s9 = inlined_call_operand.vmem [shape: f32[64,4], index: 9, kind: output, shape index: {}]
  %s10 = sld [smem:[#allocation0]]
  $region69: #{tpu_custom_call.1} parent=0
    _
  %s12 = ssub.s32 1, %s10
  %s13 = scalar_select 0, %s12, %s10
  loop: start=0, step=1, limit=4
  $region2: #{tpu_custom_call.1} parent=0 // loop_pre_header
    _
  $region3: #{tpu_custom_call.1} parent=0 // loop_header
    %s15 = sphi 0, %s19
    %p16 = scmp.ge.s32.totalorder %s15, 4
    %s25 = sphi 0, %s27
    %s28 = sphi 0, %s25
    %s29 = sphi 0, %s28
    %s45 = sphi 0, %s29
    %s49 = sphi 0, %s49
    %s51 = sphi 0, %s49
    %s52 = sphi 0, %s51
    %s66 = sphi 0, %s52
    %s70 = sphi 0, %s70
    %s72 = sphi 0, %s70
    %s73 = sphi 0, %s72
    %s87 = sphi 0, %s73
    %s91 = sphi 0, %s91
    %s93 = sphi 0, %s91
    %s94 = sphi 0, %s93
    %s108 = sphi 0, %s94
    %s112 = sphi 0, %s112
    %s114 = sphi 0, %s112
    %s115 = sphi 0, %s114
    %s129 = sphi 0, %s115
    %s133 = sphi 0, %s133
    %s135 = sphi 0, %s133
    %s136 = sphi 0, %s135
    %s150 = sphi 0, %s136
    %s154 = sphi 0, %s154
    %s156 = sphi 0, %s154
    %s157 = sphi 0, %s156
    %s171 = sphi 0, %s157
    %s175 = sphi 0, %s175
    %s177 = sphi 0, %s175
    %s178 = sphi 0, %s177
    %s192 = sphi 0, %s178
    %s196 = sphi 0, %s196
    %s198 = sphi 0, %s196
    %s199 = sphi 0, %s198
    %s213 = sphi 0, %s199
    %s219 = sphi 0, %s221
    %s222 = sphi 0, %s219
    %s223 = sphi 0, %s222
    %s239 = sphi 0, %s223
  $region4: #{tpu_custom_call.1} parent=0 // loop_header_branch
    %18 = sbr.rel (%p16) target = $region8
  $region5: #{tpu_custom_call.1} parent=0 // loop_body
    %s20 = ssub.s32 %s15, 1
    %s21 = ssub.s32 %s15, 2
    %s22 = sadd.s32 %s15, 1
    %s23 = ssub.s32 %s15, %s22
    %p24 = scmp.eq.s32.totalorder %s23, 0
    %s26 = sadd.s32 %s25, 1
    %s27 = scalar_select %p24, %s25, %s26
    %p30 = pneg %p24
    %p31 = scmp.eq.s32.totalorder %s15, 1
    %p32 = por %p30, %p31
    %p33 = scmp.ne.s32.totalorder %s25, %s28
    %p34 = scmp.eq.s32.totalorder %s15, 0
    %p35 = por %p33, %p34
    %p36 = scmp.ne.s32.totalorder %s25, %s28
    %p37 = scmp.eq.s32.totalorder %s20, 1
    %p38 = por %p36, %p37
    %p39 = scmp.ne.s32.totalorder %s28, %s29
    %p40 = scmp.eq.s32.totalorder %s20, 0
    %p41 = por %p39, %p40
    %p42 = scmp.ne.s32.totalorder %s28, %s29
    %p43 = scmp.eq.s32.totalorder %s21, 1
    %p44 = por %p42, %p43
    %p46 = scmp.ne.s32.totalorder %s29, %s45
    %p47 = scmp.eq.s32.totalorder %s21, 0
    %p48 = por %p46, %p47
    %s50 = sadd.s32 %s49, 1
    %p53 = scmp.eq.s32.totalorder %s15, 1
    %p54 = scmp.ne.s32.totalorder %s49, %s51
    %p55 = scmp.eq.s32.totalorder %s15, 0
    %p56 = por %p54, %p55
    %p57 = scmp.ne.s32.totalorder %s49, %s51
    %p58 = scmp.eq.s32.totalorder %s20, 1
    %p59 = por %p57, %p58
    %p60 = scmp.ne.s32.totalorder %s51, %s52
    %p61 = scmp.eq.s32.totalorder %s20, 0
    %p62 = por %p60, %p61
    %p63 = scmp.ne.s32.totalorder %s51, %s52
    %p64 = scmp.eq.s32.totalorder %s21, 1
    %p65 = por %p63, %p64
    %p67 = scmp.ne.s32.totalorder %s52, %s66
    %p68 = scmp.eq.s32.totalorder %s21, 0
    %p69 = por %p67, %p68
    %s71 = sadd.s32 %s70, 1
    %p74 = scmp.eq.s32.totalorder %s15, 1
    %p75 = scmp.ne.s32.totalorder %s70, %s72
    %p76 = scmp.eq.s32.totalorder %s15, 0
    %p77 = por %p75, %p76
    %p78 = scmp.ne.s32.totalorder %s70, %s72
    %p79 = scmp.eq.s32.totalorder %s20, 1
    %p80 = por %p78, %p79
    %p81 = scmp.ne.s32.totalorder %s72, %s73
    %p82 = scmp.eq.s32.totalorder %s20, 0
    %p83 = por %p81, %p82
    %p84 = scmp.ne.s32.totalorder %s72, %s73
    %p85 = scmp.eq.s32.totalorder %s21, 1
    %p86 = por %p84, %p85
    %p88 = scmp.ne.s32.totalorder %s73, %s87
    %p89 = scmp.eq.s32.totalorder %s21, 0
    %p90 = por %p88, %p89
    %s92 = sadd.s32 %s91, 1
    %p95 = scmp.eq.s32.totalorder %s15, 1
    %p96 = scmp.ne.s32.totalorder %s91, %s93
    %p97 = scmp.eq.s32.totalorder %s15, 0
    %p98 = por %p96, %p97
    %p99 = scmp.ne.s32.totalorder %s91, %s93
    %p100 = scmp.eq.s32.totalorder %s20, 1
    %p101 = por %p99, %p100
    %p102 = scmp.ne.s32.totalorder %s93, %s94
    %p103 = scmp.eq.s32.totalorder %s20, 0
    %p104 = por %p102, %p103
    %p105 = scmp.ne.s32.totalorder %s93, %s94
    %p106 = scmp.eq.s32.totalorder %s21, 1
    %p107 = por %p105, %p106
    %p109 = scmp.ne.s32.totalorder %s94, %s108
    %p110 = scmp.eq.s32.totalorder %s21, 0
    %p111 = por %p109, %p110
    %s113 = sadd.s32 %s112, 1
    %p116 = scmp.eq.s32.totalorder %s15, 1
    %p117 = scmp.ne.s32.totalorder %s112, %s114
    %p118 = scmp.eq.s32.totalorder %s15, 0
    %p119 = por %p117, %p118
    %p120 = scmp.ne.s32.totalorder %s112, %s114
    %p121 = scmp.eq.s32.totalorder %s20, 1
    %p122 = por %p120, %p121
    %p123 = scmp.ne.s32.totalorder %s114, %s115
    %p124 = scmp.eq.s32.totalorder %s20, 0
    %p125 = por %p123, %p124
    %p126 = scmp.ne.s32.totalorder %s114, %s115
    %p127 = scmp.eq.s32.totalorder %s21, 1
    %p128 = por %p126, %p127
    %p130 = scmp.ne.s32.totalorder %s115, %s129
    %p131 = scmp.eq.s32.totalorder %s21, 0
    %p132 = por %p130, %p131
    %s134 = sadd.s32 %s133, 1
    %p137 = scmp.eq.s32.totalorder %s15, 1
    %p138 = scmp.ne.s32.totalorder %s133, %s135
    %p139 = scmp.eq.s32.totalorder %s15, 0
    %p140 = por %p138, %p139
    %p141 = scmp.ne.s32.totalorder %s133, %s135
    %p142 = scmp.eq.s32.totalorder %s20, 1
    %p143 = por %p141, %p142
    %p144 = scmp.ne.s32.totalorder %s135, %s136
    %p145 = scmp.eq.s32.totalorder %s20, 0
    %p146 = por %p144, %p145
    %p147 = scmp.ne.s32.totalorder %s135, %s136
    %p148 = scmp.eq.s32.totalorder %s21, 1
    %p149 = por %p147, %p148
    %p151 = scmp.ne.s32.totalorder %s136, %s150
    %p152 = scmp.eq.s32.totalorder %s21, 0
    %p153 = por %p151, %p152
    %s155 = sadd.s32 %s154, 1
    %p158 = scmp.eq.s32.totalorder %s15, 1
    %p159 = scmp.ne.s32.totalorder %s154, %s156
    %p160 = scmp.eq.s32.totalorder %s15, 0
    %p161 = por %p159, %p160
    %p162 = scmp.ne.s32.totalorder %s154, %s156
    %p163 = scmp.eq.s32.totalorder %s20, 1
    %p164 = por %p162, %p163
    %p165 = scmp.ne.s32.totalorder %s156, %s157
    %p166 = scmp.eq.s32.totalorder %s20, 0
    %p167 = por %p165, %p166
    %p168 = scmp.ne.s32.totalorder %s156, %s157
    %p169 = scmp.eq.s32.totalorder %s21, 1
    %p170 = por %p168, %p169
    %p172 = scmp.ne.s32.totalorder %s157, %s171
    %p173 = scmp.eq.s32.totalorder %s21, 0
    %p174 = por %p172, %p173
    %s176 = sadd.s32 %s175, 1
    %p179 = scmp.eq.s32.totalorder %s15, 1
    %p180 = scmp.ne.s32.totalorder %s175, %s177
    %p181 = scmp.eq.s32.totalorder %s15, 0
    %p182 = por %p180, %p181
    %p183 = scmp.ne.s32.totalorder %s175, %s177
    %p184 = scmp.eq.s32.totalorder %s20, 1
    %p185 = por %p183, %p184
    %p186 = scmp.ne.s32.totalorder %s177, %s178
    %p187 = scmp.eq.s32.totalorder %s20, 0
    %p188 = por %p186, %p187
    %p189 = scmp.ne.s32.totalorder %s177, %s178
    %p190 = scmp.eq.s32.totalorder %s21, 1
    %p191 = por %p189, %p190
    %p193 = scmp.ne.s32.totalorder %s178, %s192
    %p194 = scmp.eq.s32.totalorder %s21, 0
    %p195 = por %p193, %p194
    %s197 = sadd.s32 %s196, 1
    %p200 = scmp.eq.s32.totalorder %s15, 1
    %p201 = scmp.ne.s32.totalorder %s196, %s198
    %p202 = scmp.eq.s32.totalorder %s15, 0
    %p203 = por %p201, %p202
    %p204 = scmp.ne.s32.totalorder %s196, %s198
    %p205 = scmp.eq.s32.totalorder %s20, 1
    %p206 = por %p204, %p205
    %p207 = scmp.ne.s32.totalorder %s198, %s199
    %p208 = scmp.eq.s32.totalorder %s20, 0
    %p209 = por %p207, %p208
    %p210 = scmp.ne.s32.totalorder %s198, %s199
    %p211 = scmp.eq.s32.totalorder %s21, 1
    %p212 = por %p210, %p211
    %p214 = scmp.ne.s32.totalorder %s199, %s213
    %p215 = scmp.eq.s32.totalorder %s21, 0
    %p216 = por %p214, %p215
    %s217 = ssub.s32 %s15, %s22
    %p218 = scmp.eq.s32.totalorder %s217, 0
    %s220 = sadd.s32 %s219, 1
    %s221 = scalar_select %p218, %s219, %s220
    %p224 = pneg %p218
    %p225 = scmp.eq.s32.totalorder %s15, 1
    %p226 = por %p224, %p225
    %p227 = scmp.ne.s32.totalorder %s219, %s222
    %p228 = scmp.eq.s32.totalorder %s15, 0
    %p229 = por %p227, %p228
    %p230 = scmp.ne.s32.totalorder %s219, %s222
    %p231 = scmp.eq.s32.totalorder %s20, 1
    %p232 = por %p230, %p231
    %p233 = scmp.ne.s32.totalorder %s222, %s223
    %p234 = scmp.eq.s32.totalorder %s20, 0
    %p235 = por %p233, %p234
    %p236 = scmp.ne.s32.totalorder %s222, %s223
    %p237 = scmp.eq.s32.totalorder %s21, 1
    %p238 = por %p236, %p237
    %p240 = scmp.ne.s32.totalorder %s223, %s239
    %p241 = scmp.eq.s32.totalorder %s21, 0
    %p242 = por %p240, %p241
    %p243 = scmp.le.s32.totalorder 1, %s15
    %p244 = scmp.lt.s32.totalorder %s15, 3
    %p245 = pnand %p243, %p244
    %p246 = pneg %p245
    // Predicated region
    $region9: #{tpu_custom_call.1} parent=5 // pred_check
      _
    $region10: #{tpu_custom_call.1} parent=5 // pred_check_branch
      %248 = sbr.rel (%p245) target = $region12
    $region11: #{tpu_custom_call.1} parent=5 // pred_region
      %s249 = ssub.s32 %s15, 1
      // Predicated region
      $region13: #{tpu_custom_call.1} parent=11 // pred_check
        %p250 = pneg %p62
      $region14: #{tpu_custom_call.1} parent=11 // pred_check_branch
        %252 = sbr.rel (%p250) target = $region16
      $region15: #{tpu_custom_call.1} parent=11 // pred_region
        _
      $region16: #{tpu_custom_call.1} parent=11 // pred_fallthru
        _
      // Predicated region
      $region17: #{tpu_custom_call.1} parent=11 // pred_check
        %p253 = pneg %p83
      $region18: #{tpu_custom_call.1} parent=11 // pred_check_branch
        %255 = sbr.rel (%p253) target = $region20
      $region19: #{tpu_custom_call.1} parent=11 // pred_region
        _
      $region20: #{tpu_custom_call.1} parent=11 // pred_fallthru
        _
      // Predicated region
      $region21: #{tpu_custom_call.1} parent=11 // pred_check
        %p256 = pneg %p104
      $region22: #{tpu_custom_call.1} parent=11 // pred_check_branch
        %258 = sbr.rel (%p256) target = $region24
      $region23: #{tpu_custom_call.1} parent=11 // pred_region
        _
      $region24: #{tpu_custom_call.1} parent=11 // pred_fallthru
        _
      // Predicated region
      $region25: #{tpu_custom_call.1} parent=11 // pred_check
        %p259 = pneg %p125
      $region26: #{tpu_custom_call.1} parent=11 // pred_check_branch
        %261 = sbr.rel (%p259) target = $region28
      $region27: #{tpu_custom_call.1} parent=11 // pred_region
        _
      $region28: #{tpu_custom_call.1} parent=11 // pred_fallthru
        _
      // Predicated region
      $region29: #{tpu_custom_call.1} parent=11 // pred_check
        %p262 = pneg %p146
      $region30: #{tpu_custom_call.1} parent=11 // pred_check_branch
        %264 = sbr.rel (%p262) target = $region32
      $region31: #{tpu_custom_call.1} parent=11 // pred_region
        _
      $region32: #{tpu_custom_call.1} parent=11 // pred_fallthru
        _
      // Predicated region
      $region33: #{tpu_custom_call.1} parent=11 // pred_check
        %p265 = pneg %p167
      $region34: #{tpu_custom_call.1} parent=11 // pred_check_branch
        %267 = sbr.rel (%p265) target = $region36
      $region35: #{tpu_custom_call.1} parent=11 // pred_region
        _
      $region36: #{tpu_custom_call.1} parent=11 // pred_fallthru
        _
      // Predicated region
      $region37: #{tpu_custom_call.1} parent=11 // pred_check
        %p268 = pneg %p188
      $region38: #{tpu_custom_call.1} parent=11 // pred_check_branch
        %270 = sbr.rel (%p268) target = $region40
      $region39: #{tpu_custom_call.1} parent=11 // pred_region
        _
      $region40: #{tpu_custom_call.1} parent=11 // pred_fallthru
        _
      // Predicated region
      $region41: #{tpu_custom_call.1} parent=11 // pred_check
        %p271 = pneg %p209
      $region42: #{tpu_custom_call.1} parent=11 // pred_check_branch
        %273 = sbr.rel (%p271) target = $region44
      $region43: #{tpu_custom_call.1} parent=11 // pred_region
        _
      $region44: #{tpu_custom_call.1} parent=11 // pred_fallthru
        _
    $region12: #{tpu_custom_call.1} parent=5 // pred_fallthru
      _
    %p274 = scmp.lt.s32.totalorder %s15, 2
    // Predicated region
    $region45: #{tpu_custom_call.1} parent=5 // pred_check
      %p275 = pneg %p274
    $region46: #{tpu_custom_call.1} parent=5 // pred_check_branch
      %277 = sbr.rel (%p275) target = $region48
    $region47: #{tpu_custom_call.1} parent=5 // pred_region
      // Predicated region
      $region49: #{tpu_custom_call.1} parent=47 // pred_check
        %p278 = pneg %p35
      $region50: #{tpu_custom_call.1} parent=47 // pred_check_branch
        %280 = sbr.rel (%p278) target = $region52
      $region51: #{tpu_custom_call.1} parent=47 // pred_region
        %s281 = smul.u32 4, %s15
        %p282 = scmp.lt.s32.totalorder %s281, 7
        %s283 = scalar_select %p282, %s281, 7
        %s284 = smul.addr %s283, 8
        %s285 = scalar_lea.vmem %s0, %s284
        %s286 = smul.u32 4, %s15
      $region52: #{tpu_custom_call.1} parent=47 // pred_fallthru
        _
    $region48: #{tpu_custom_call.1} parent=5 // pred_fallthru
      _
    %p287 = scmp.le.s32.totalorder 1, %s15
    %p288 = scmp.lt.s32.totalorder %s15, 3
    %p289 = pnand %p287, %p288
    %p290 = pneg %p289
    // Predicated region
    $region53: #{tpu_custom_call.1} parent=5 // pred_check
      _
    $region54: #{tpu_custom_call.1} parent=5 // pred_check_branch
      %292 = sbr.rel (%p289) target = $region56
    $region55: #{tpu_custom_call.1} parent=5 // pred_region
      %s293 = ssub.s32 %s15, 1
      %s294 = smul.u32 4, %s20
      %p295 = scmp.lt.s32.totalorder %s294, 7
      %s296 = scalar_select %p295, %s294, 7
      %s297 = smul.addr %s296, 8
      %s298 = scalar_lea.vmem %s0, %s297
      %p299 = pneg %p41
      %p300 = pneg %p38
      %p301 = pneg %p62
      %p302 = pneg %p59
      %p303 = pneg %p83
      %p304 = pneg %p80
      %p305 = pneg %p104
      %p306 = pneg %p101
      %p307 = pneg %p125
      %p308 = pneg %p122
      %p309 = pneg %p146
      %p310 = pneg %p143
      %p311 = pneg %p167
      %p312 = pneg %p164
      %p313 = pneg %p188
      %p314 = pneg %p185
      %p315 = pneg %p209
      %p316 = pneg %p206
      %p317 = pneg %p235
      %p318 = pneg %p232
      %s319 = smul.u32 4, %s20
      %p320 = scmp.lt.s32.totalorder %s319, 7
      %s321 = scalar_select %p320, %s319, 7
      %s322 = smul.addr %s321, 8
      %s323 = scalar_lea.vmem %s9, %s322
      %s324 = smul.u32 4, %s20
      %p325 = scmp.lt.s32.totalorder %s324, 7
      %s326 = scalar_select %p325, %s324, 7
      %s327 = smul.addr %s326, 8
      %s328 = scalar_lea.vmem %s0, %s327
      %s329 = smul.u32 4, %s20
      %s330 = smul.u32 4, %s20
      %p331 = scmp.lt.s32.totalorder %s330, 7
      %s332 = scalar_select %p331, %s330, 7
      %s333 = smul.addr %s332, 8
      %s334 = scalar_lea.vmem %s9, %s333
      %s335 = smul.u32 4, %s20
      %v337 = vld [vmem:[%s328] sm:$0xff]
      %v338 = vld [vmem:[%s328 + $0x8] sm:$0xff]
      %v339 = vld [vmem:[%s328 + $0x10] sm:$0xff]
      %v340 = vld [vmem:[%s328 + $0x18] sm:$0xff]
      %v341 = vpack.c.bf16 %v338, %v337
      %v342 = vpack.c.bf16 %v340, %v339
      %v343 = vld [vmem:[%s1] sm:$0x3]
      %v344 = vld [vmem:[%s2] sm:$0x1]
      %v346 = vlaneseq
      %v347 = vshrl.u32 %v346, 7
      %v348 = vsub.s32 0, %v347
      %v349 = vrot.slane %v344, %v348
      %vm351 = vcmask 31744
      %v353 = vsel %vm351, %v341, 0
      %v356 = vsel %vm351, %v342, 0
      %vm358 = vcmask 1041408
      %v360 = vsel %vm358, %v343, 0
      %362 = vmatprep.subr.bf16.mxu0 0
      %363 = vmatpush1.bf16.msra.mxu0 %v360
      %364 = vmatprep.subr.bf16.mxu0 0
      %365 = vmatpush1.bf16.msra.mxu0 0
      %366 = vmatprep.subr.bf16.mxu0 0
      %367 = vmatpush1.bf16.msra.mxu0 0
      %368 = vmatprep.subr.bf16.mxu0 0
      %369 = vmatpush1.bf16.msra.mxu0 0
      %370 = vmatprep.subr.bf16.mxu0 0
      %371 = vmatpush1.bf16.msra.mxu0 0
      %372 = vmatprep.subr.bf16.mxu0 0
      %373 = vmatpush1.bf16.msra.mxu0 0
      %374 = vmatprep.subr.bf16.mxu0 0
      %375 = vmatpush1.bf16.msra.mxu0 0
      %376 = vmatprep.subr.bf16.mxu0 0
      %377 = vmatpush1.bf16.msra.mxu0 0
      %378 = vmatprep.subr.bf16.mxu0 0
      %379 = vmatpush1.bf16.msra.mxu0 0
      %380 = vmatprep.subr.bf16.mxu0 0
      %381 = vmatpush1.bf16.msra.mxu0 0
      %382 = vmatprep.subr.bf16.mxu0 0
      %383 = vmatpush1.bf16.msra.mxu0 0
      %384 = vmatprep.subr.bf16.mxu0 0
      %385 = vmatpush1.bf16.msra.mxu0 0
      %386 = vmatprep.subr.bf16.mxu0 0
      %387 = vmatpush1.bf16.msra.mxu0 0
      %388 = vmatprep.subr.bf16.mxu0 0
      %389 = vmatpush1.bf16.msra.mxu0 0
      %390 = vmatprep.subr.bf16.mxu0 0
      %391 = vmatpush1.bf16.msra.mxu0 0
      %392 = vmatprep.subr.bf16.mxu0 0
      %393 = vmatpush1.bf16.msra.mxu0 0
      %394 = vmatprep.mubr.bf16.mxu0 0
      %395 = vmatmul.mubr.bf16.gmra.mrb[0].mxu0 %v353
      %v396 = vpop.f32.mrb[0].mxu0
      %v397 = vadd.f32 %v349, %v396
      %v398 = vpop.f32.mrb[0].mxu0
      %v399 = vpop.f32.mrb[0].mxu0
      %v400 = vadd.f32 %v349, %v399
      %v401 = vpop.f32.mrb[0].mxu0
      %402 = vmatprep.mubr.bf16.mxu0 0
      %403 = vmatmul.mubr.bf16.gmra.mrb[0].mxu0 %v356
      %v404 = vpop.f32.mrb[0].mxu0
      %v405 = vadd.f32 %v349, %v404
      %v406 = vpop.f32.mrb[0].mxu0
      %v407 = vpop.f32.mrb[0].mxu0
      %v408 = vadd.f32 %v349, %v407
      %v409 = vpop.f32.mrb[0].mxu0
      %410 = vdwg.mxu0
      %v411 = vmax.f32 %v397, 0.0
      %v412 = vmax.f32 %v400, 0.0
      %v413 = vmax.f32 %v405, 0.0
      %v414 = vmax.f32 %v408, 0.0
      %v415 = vpack.c.bf16 %v412, %v411
      %v416 = vpack.c.bf16 %v414, %v413
      %v417 = vld [vmem:[%s3] sm:$0xf]
      %v418 = vld [vmem:[%s3 + $0x4] sm:$0xf]
      %v419 = vld [vmem:[%s3 + $0x8] sm:$0xf]
      %v420 = vld [vmem:[%s3 + $0xc] sm:$0xf]
      %v421 = vld [vmem:[%s3 + $0x10] sm:$0xf]
      %v422 = vld [vmem:[%s3 + $0x14] sm:$0xf]
      %v423 = vld [vmem:[%s3 + $0x18] sm:$0xf]
      %v424 = vld [vmem:[%s3 + $0x1c] sm:$0xf]
      %v425 = vld [vmem:[%s4] sm:$0x1]
      %v427 = vlaneseq
      %v428 = vshrl.u32 %v427, 7
      %v429 = vsub.s32 0, %v428
      %v430 = vrot.slane %v425, %v429
      %v440 = vunpack.c.l.b16 %v417
      %v441 = vunpack.c.l.b16 %v418
      %v442 = vunpack.c.l.b16 %v419
      %v443 = vunpack.c.l.b16 %v420
      %v444 = vunpack.c.l.b16 %v421
      %v445 = vunpack.c.l.b16 %v422
      %v446 = vunpack.c.l.b16 %v423
      %v447 = vunpack.c.l.b16 %v424
      %v448 = vpack.c.b16 %v441, %v440
      %v449 = vpack.c.b16 %v443, %v442
      %v450 = vpack.c.b16 %v445, %v444
      %v451 = vpack.c.b16 %v447, %v446
      %vm456 = vcmask 523264
      %v458 = vsel %vm456, %v415, 0
      %v461 = vsel %vm456, %v416, 0
      %463 = vmatprep.subr.bf16.mxu0 0
      %464 = vmatpush1.bf16.msra.mxu0 %v448
      %465 = vmatprep.subr.bf16.mxu0 0
      %466 = vmatpush1.bf16.msra.mxu0 %v449
      %467 = vmatprep.subr.bf16.mxu0 0
      %468 = vmatpush1.bf16.msra.mxu0 %v450
      %469 = vmatprep.subr.bf16.mxu0 0
      %470 = vmatpush1.bf16.msra.mxu0 %v451
      %471 = vmatprep.subr.bf16.mxu0 0
      %472 = vmatpush1.bf16.msra.mxu0 0
      %473 = vmatprep.subr.bf16.mxu0 0
      %474 = vmatpush1.bf16.msra.mxu0 0
      %475 = vmatprep.subr.bf16.mxu0 0
      %476 = vmatpush1.bf16.msra.mxu0 0
      %477 = vmatprep.subr.bf16.mxu0 0
      %478 = vmatpush1.bf16.msra.mxu0 0
      %479 = vmatprep.subr.bf16.mxu0 0
      %480 = vmatpush1.bf16.msra.mxu0 0
      %481 = vmatprep.subr.bf16.mxu0 0
      %482 = vmatpush1.bf16.msra.mxu0 0
      %483 = vmatprep.subr.bf16.mxu0 0
      %484 = vmatpush1.bf16.msra.mxu0 0
      %485 = vmatprep.subr.bf16.mxu0 0
      %486 = vmatpush1.bf16.msra.mxu0 0
      %487 = vmatprep.subr.bf16.mxu0 0
      %488 = vmatpush1.bf16.msra.mxu0 0
      %489 = vmatprep.subr.bf16.mxu0 0
      %490 = vmatpush1.bf16.msra.mxu0 0
      %491 = vmatprep.subr.bf16.mxu0 0
      %492 = vmatpush1.bf16.msra.mxu0 0
      %493 = vmatprep.subr.bf16.mxu0 0
      %494 = vmatpush1.bf16.msra.mxu0 0
      %495 = vmatprep.mubr.bf16.mxu0 0
      %496 = vmatmul.mubr.bf16.gmra.mrb[0].mxu0 %v458
      %v497 = vpop.f32.mrb[0].mxu0
      %v498 = vadd.f32 %v430, %v497
      %v499 = vpop.f32.mrb[0].mxu0
      %v500 = vpop.f32.mrb[0].mxu0
      %v501 = vadd.f32 %v430, %v500
      %v502 = vpop.f32.mrb[0].mxu0
      %503 = vmatprep.mubr.bf16.mxu0 0
      %504 = vmatmul.mubr.bf16.gmra.mrb[0].mxu0 %v461
      %v505 = vpop.f32.mrb[0].mxu0
      %v506 = vadd.f32 %v430, %v505
      %v507 = vpop.f32.mrb[0].mxu0
      %v508 = vpop.f32.mrb[0].mxu0
      %v509 = vadd.f32 %v430, %v508
      %v510 = vpop.f32.mrb[0].mxu0
      %511 = vdwg.mxu0
      %v512 = vmax.f32 %v498, 0.0
      %v513 = vmax.f32 %v501, 0.0
      %v514 = vmax.f32 %v506, 0.0
      %v515 = vmax.f32 %v509, 0.0
      %v516 = vpack.c.bf16 %v513, %v512
      %v517 = vpack.c.bf16 %v515, %v514
      %v518 = vld [vmem:[%s5] sm:$0xf]
      %v519 = vld [vmem:[%s5 + $0x4] sm:$0xf]
      %v520 = vld [vmem:[%s5 + $0x8] sm:$0xf]
      %v521 = vld [vmem:[%s5 + $0xc] sm:$0xf]
      %v522 = vld [vmem:[%s6] sm:$0x1]
      %v524 = vlaneseq
      %v525 = vshrl.u32 %v524, 7
      %v526 = vsub.s32 0, %v525
      %v527 = vrot.slane %v522, %v526
      %v533 = vunpack.c.l.b16 %v518
      %v534 = vunpack.c.l.b16 %v519
      %v535 = vunpack.c.l.b16 %v520
      %v536 = vunpack.c.l.b16 %v521
      %v537 = vpack.c.b16 %v534, %v533
      %v538 = vpack.c.b16 %v536, %v535
      %vm541 = vcmask 261120
      %v543 = vsel %vm541, %v516, 0
      %v546 = vsel %vm541, %v517, 0
      %548 = vmatprep.subr.bf16.mxu0 0
      %549 = vmatpush1.bf16.msra.mxu0 %v537
      %550 = vmatprep.subr.bf16.mxu0 0
      %551 = vmatpush1.bf16.msra.mxu0 %v538
      %552 = vmatprep.subr.bf16.mxu0 0
      %553 = vmatpush1.bf16.msra.mxu0 0
      %554 = vmatprep.subr.bf16.mxu0 0
      %555 = vmatpush1.bf16.msra.mxu0 0
      %556 = vmatprep.subr.bf16.mxu0 0
      %557 = vmatpush1.bf16.msra.mxu0 0
      %558 = vmatprep.subr.bf16.mxu0 0
      %559 = vmatpush1.bf16.msra.mxu0 0
      %560 = vmatprep.subr.bf16.mxu0 0
      %561 = vmatpush1.bf16.msra.mxu0 0
      %562 = vmatprep.subr.bf16.mxu0 0
      %563 = vmatpush1.bf16.msra.mxu0 0
      %564 = vmatprep.subr.bf16.mxu0 0
      %565 = vmatpush1.bf16.msra.mxu0 0
      %566 = vmatprep.subr.bf16.mxu0 0
      %567 = vmatpush1.bf16.msra.mxu0 0
      %568 = vmatprep.subr.bf16.mxu0 0
      %569 = vmatpush1.bf16.msra.mxu0 0
      %570 = vmatprep.subr.bf16.mxu0 0
      %571 = vmatpush1.bf16.msra.mxu0 0
      %572 = vmatprep.subr.bf16.mxu0 0
      %573 = vmatpush1.bf16.msra.mxu0 0
      %574 = vmatprep.subr.bf16.mxu0 0
      %575 = vmatpush1.bf16.msra.mxu0 0
      %576 = vmatprep.subr.bf16.mxu0 0
      %577 = vmatpush1.bf16.msra.mxu0 0
      %578 = vmatprep.subr.bf16.mxu0 0
      %579 = vmatpush1.bf16.msra.mxu0 0
      %580 = vmatprep.mubr.bf16.mxu0 0
      %581 = vmatmul.mubr.bf16.gmra.mrb[0].mxu0 %v543
      %v582 = vpop.f32.mrb[0].mxu0
      %v583 = vadd.f32 %v527, %v582
      %v584 = vpop.f32.mrb[0].mxu0
      %v585 = vpop.f32.mrb[0].mxu0
      %v586 = vadd.f32 %v527, %v585
      %v587 = vpop.f32.mrb[0].mxu0
      %588 = vmatprep.mubr.bf16.mxu0 0
      %589 = vmatmul.mubr.bf16.gmra.mrb[0].mxu0 %v546
      %v590 = vpop.f32.mrb[0].mxu0
      %v591 = vadd.f32 %v527, %v590
      %v592 = vpop.f32.mrb[0].mxu0
      %v593 = vpop.f32.mrb[0].mxu0
      %v594 = vadd.f32 %v527, %v593
      %v595 = vpop.f32.mrb[0].mxu0
      %596 = vdwg.mxu0
      %v597 = vmax.f32 %v583, 0.0
      %v598 = vmax.f32 %v586, 0.0
      %v599 = vmax.f32 %v591, 0.0
      %v600 = vmax.f32 %v594, 0.0
      %v601 = vpack.c.bf16 %v598, %v597
      %v602 = vpack.c.bf16 %v600, %v599
      %v603 = vld [vmem:[%s7] sm:$0xf]
      %v604 = vld [vmem:[%s7 + $0x4] sm:$0xf]
      %v605 = vld [vmem:[%s8] sm:$0x1]
      %v607 = vlaneseq
      %v608 = vshrl.u32 %v607, 7
      %v609 = vsub.s32 0, %v608
      %v610 = vrot.slane %v605, %v609
      %v614 = vunpack.c.l.b16 %v603
      %v615 = vunpack.c.l.b16 %v604
      %v616 = vpack.c.b16 %v615, %v614
      %vm618 = vcmask 130048
      %v620 = vsel %vm618, %v601, 0
      %v623 = vsel %vm618, %v602, 0
      %625 = vmatprep.subr.bf16.mxu0 0
      %626 = vmatpush1.bf16.msra.mxu0 %v616
      %627 = vmatprep.subr.bf16.mxu0 0
      %628 = vmatpush1.bf16.msra.mxu0 0
      %629 = vmatprep.subr.bf16.mxu0 0
      %630 = vmatpush1.bf16.msra.mxu0 0
      %631 = vmatprep.subr.bf16.mxu0 0
      %632 = vmatpush1.bf16.msra.mxu0 0
      %633 = vmatprep.subr.bf16.mxu0 0
      %634 = vmatpush1.bf16.msra.mxu0 0
      %635 = vmatprep.subr.bf16.mxu0 0
      %636 = vmatpush1.bf16.msra.mxu0 0
      %637 = vmatprep.subr.bf16.mxu0 0
      %638 = vmatpush1.bf16.msra.mxu0 0
      %639 = vmatprep.subr.bf16.mxu0 0
      %640 = vmatpush1.bf16.msra.mxu0 0
      %641 = vmatprep.subr.bf16.mxu0 0
      %642 = vmatpush1.bf16.msra.mxu0 0
      %643 = vmatprep.subr.bf16.mxu0 0
      %644 = vmatpush1.bf16.msra.mxu0 0
      %645 = vmatprep.subr.bf16.mxu0 0
      %646 = vmatpush1.bf16.msra.mxu0 0
      %647 = vmatprep.subr.bf16.mxu0 0
      %648 = vmatpush1.bf16.msra.mxu0 0
      %649 = vmatprep.subr.bf16.mxu0 0
      %650 = vmatpush1.bf16.msra.mxu0 0
      %651 = vmatprep.subr.bf16.mxu0 0
      %652 = vmatpush1.bf16.msra.mxu0 0
      %653 = vmatprep.subr.bf16.mxu0 0
      %654 = vmatpush1.bf16.msra.mxu0 0
      %655 = vmatprep.subr.bf16.mxu0 0
      %656 = vmatpush1.bf16.msra.mxu0 0
      %657 = vmatprep.mubr.bf16.mxu0 0
      %658 = vmatmul.mubr.bf16.gmra.mrb[0].mxu0 %v620
      %v659 = vpop.f32.mrb[0].mxu0
      %v660 = vadd.f32 %v610, %v659
      %v661 = vpop.f32.mrb[0].mxu0
      %v662 = vpop.f32.mrb[0].mxu0
      %v663 = vadd.f32 %v610, %v662
      %v664 = vpop.f32.mrb[0].mxu0
      %665 = vmatprep.mubr.bf16.mxu0 0
      %666 = vmatmul.mubr.bf16.gmra.mrb[0].mxu0 %v623
      %v667 = vpop.f32.mrb[0].mxu0
      %v668 = vadd.f32 %v610, %v667
      %v669 = vpop.f32.mrb[0].mxu0
      %v670 = vpop.f32.mrb[0].mxu0
      %v671 = vadd.f32 %v610, %v670
      %v672 = vpop.f32.mrb[0].mxu0
      %673 = vdwg.mxu0
      %674 = vst.msk [vmem:[%s334] sm:$0xff] %vm351, %v660
      %675 = vst.msk [vmem:[%s334 + $0x8] sm:$0xff] %vm351, %v663
      %676 = vst.msk [vmem:[%s334 + $0x10] sm:$0xff] %vm351, %v668
      %677 = vst.msk [vmem:[%s334 + $0x18] sm:$0xff] %vm351, %v671
      %s678 = smul.u32 4, %s20
      %p679 = scmp.lt.s32.totalorder %s678, 7
      %s680 = scalar_select %p679, %s678, 7
      %s681 = smul.addr %s680, 8
      %s682 = scalar_lea.vmem %s9, %s681
      // Predicated region
      $region57: #{tpu_custom_call.1} parent=55 // pred_check
        %p683 = pneg %p232
      $region58: #{tpu_custom_call.1} parent=55 // pred_check_branch
        %685 = sbr.rel (%p683) target = $region60
      $region59: #{tpu_custom_call.1} parent=55 // pred_region
        %s686 = smul.u32 4, %s20
      $region60: #{tpu_custom_call.1} parent=55 // pred_fallthru
        _
    $region56: #{tpu_custom_call.1} parent=5 // pred_fallthru
      _
    %p687 = scmp.le.s32.totalorder 2, %s15
    // Predicated region
    $region61: #{tpu_custom_call.1} parent=5 // pred_check
      %p688 = pneg %p687
    $region62: #{tpu_custom_call.1} parent=5 // pred_check_branch
      %690 = sbr.rel (%p688) target = $region64
    $region63: #{tpu_custom_call.1} parent=5 // pred_region
      %s691 = ssub.s32 %s15, 2
      // Predicated region
      $region65: #{tpu_custom_call.1} parent=63 // pred_check
        %p692 = pneg %p238
      $region66: #{tpu_custom_call.1} parent=63 // pred_check_branch
        %694 = sbr.rel (%p692) target = $region68
      $region67: #{tpu_custom_call.1} parent=63 // pred_region
        %s695 = smul.u32 4, %s21
        %p696 = scmp.lt.s32.totalorder %s695, 7
        %s697 = scalar_select %p696, %s695, 7
        %s698 = smul.addr %s697, 8
        %s699 = scalar_lea.vmem %s9, %s698
      $region68: #{tpu_custom_call.1} parent=63 // pred_fallthru
        _
    $region64: #{tpu_custom_call.1} parent=5 // pred_fallthru
      _
  $region6: #{tpu_custom_call.1} parent=0 // loop_footer
    %s19 = sadd.s32 1, %s15
  $region7: #{tpu_custom_call.1} parent=0 // loop_footer_branch
    %14 = sbr.rel target = $region3
  $region8: #{tpu_custom_call.1} parent=0 // loop_exit
    _

</llo_original>
